<compile_context>
chip_gen: v7x
topology: tpu7x:2x2x1
jax: 0.10.0
libtpu: 0.0.40
codegen_flags: <defaults>
</compile_context>

<pallas_src>
import math

import jax
import jax.numpy as jnp
from jax.experimental import pallas as pl
from jax.experimental.pallas import tpu as pltpu

_GELU_C = math.sqrt(2.0 / math.pi)

# Conservative per-TensorCore VMEM budgets (v7x has only 64 MiB per TC).
_VMEM_ALLOC_BUDGET = 40 * 1024 * 1024   # what our blocks may occupy
_VMEM_LIMIT_BYTES = 56 * 1024 * 1024    # scoped limit handed to Mosaic


def _round_up(v, m):
    return (v + m - 1) // m * m


def _gelu_f32(h):
    # NewGELU (exact tanh form used by OpenAI / GPT-2), elementwise in f32.
    return 0.5 * h * (1.0 + jnp.tanh(_GELU_C * (h + 0.044715 * (h * h * h))))


def _make_kernels(cast_bf16):
    """Build the three kernel variants; cast_bf16 downcasts MXU operands only."""

    def dot_fc(x_ref, wfc_ref, bfc_ref):
        a, b = x_ref[...], wfc_ref[...]
        if cast_bf16:
            a, b = a.astype(jnp.bfloat16), b.astype(jnp.bfloat16)
        h = jnp.dot(a, b, preferred_element_type=jnp.float32)
        return h + bfc_ref[...].astype(jnp.float32)

    def dot_proj(g, wproj_ref):
        w = wproj_ref[...]
        if cast_bf16:
            g, w = g.astype(jnp.bfloat16), w.astype(jnp.bfloat16)
        else:
            g = g.astype(w.dtype)
        return jnp.dot(g, w, preferred_element_type=jnp.float32)

    def kernel_resident(x_ref, wfc_ref, bfc_ref, wproj_ref, bproj_ref, o_ref):
        # Single reduction step: weights fully resident, no accumulator at all.
        g = _gelu_f32(dot_fc(x_ref, wfc_ref, bfc_ref))
        out = dot_proj(g, wproj_ref) + bproj_ref[...].astype(jnp.float32)
        o_ref[...] = out.astype(o_ref.dtype)

    def kernel_stream_f32out(x_ref, wfc_ref, bfc_ref, wproj_ref, bproj_ref, o_ref):
        # f32 output: accumulate straight into o_ref (resident across j).
        j = pl.program_id(1)

        @pl.when(j == 0)
        def _():
            # Fold b_proj into the accumulator init.
            o_ref[...] = jnp.broadcast_to(
                bproj_ref[...].astype(o_ref.dtype), o_ref.shape)

        g = _gelu_f32(dot_fc(x_ref, wfc_ref, bfc_ref))
        o_ref[...] += dot_proj(g, wproj_ref)

    def kernel_stream_scratch(x_ref, wfc_ref, bfc_ref, wproj_ref, bproj_ref,
                              o_ref, acc_ref):
        # Non-f32 output: f32 scratch accumulator, cast once at the last j.
        j = pl.program_id(1)

        @pl.when(j == 0)
        def _():
            acc_ref[...] = jnp.broadcast_to(
                bproj_ref[...].astype(jnp.float32), acc_ref.shape)

        g = _gelu_f32(dot_fc(x_ref, wfc_ref, bfc_ref))
        acc_ref[...] += dot_proj(g, wproj_ref)

        @pl.when(j == pl.num_programs(1) - 1)
        def _():
            o_ref[...] = acc_ref[...].astype(o_ref.dtype)

    return kernel_resident, kernel_stream_f32out, kernel_stream_scratch


def mlp_pallas(x, w_fc, b_fc, w_proj, b_proj, *, tile_m=None, tile_h=None,
               mxu_bf16=False, out_dtype=None):
    """GPT-2 MLP forward: (x @ w_fc + b_fc) -> NewGELU -> (@ w_proj + b_proj).

    x: (B, T, C).  w_fc: (C, 4C) pre-transposed, b_fc: (4C,),
    w_proj: (4C, C) pre-transposed, b_proj: (C,).
    mxu_bf16: cast matmul operands to bf16 in-kernel (f32 MXU accumulation and
      f32 GELU retained).  Recommended for f32 inputs on v6e/v7x; default False
      preserves exact f32 semantics (f32 operands run the MXU multi-pass).
    """
    B, T, C = x.shape
    H = w_fc.shape[1]
    M = B * T

    out_dtype = jnp.dtype(x.dtype) if out_dtype is None else jnp.dtype(out_dtype)
    elem = jnp.dtype(x.dtype).itemsize
    w_elem = jnp.dtype(w_fc.dtype).itemsize
    out_elem = out_dtype.itemsize

    # Sublane alignment: 16 rows if any 2-byte tile is involved, else 8.
    row_align = 8 if (elem == 4 and out_elem == 4) else 16

    Cp = _round_up(C, 128)          # lane-dense output blocks (no masked vst)
    Hp128 = _round_up(H, 128)

    # --- tile_h: make the weights fully resident when they fit the budget.
    # (2 pipeline buffers per input assumed; Buffered(1) would halve this.)
    resident_w_bytes = 2 * 2 * Cp * Hp128 * w_elem
    if tile_h is None:
        if resident_w_bytes <= _VMEM_ALLOC_BUDGET // 2:
            tile_h = Hp128                      # 1 reduction step, no re-stream
        else:
            tile_h = min(1024, Hp128)           # fewer, larger reduction steps
    tile_h = max(128, _round_up(tile_h, 128))

    Hp = _round_up(H, tile_h)
    nj = Hp // tile_h
    acc_needed = (nj > 1) and (out_dtype != jnp.dtype(jnp.float32))

    # --- tile_m: as large as the remaining VMEM budget allows (<= 512 rows).
    w_tile_bytes = 2 * 2 * Cp * tile_h * w_elem
    if tile_m is None:
        per_row_bytes = Cp * (2 * elem + 2 * out_elem + (4 if acc_needed else 0))
        budget_rows = max(_VMEM_ALLOC_BUDGET - w_tile_bytes,
                          row_align * per_row_bytes)
        cap_rows = budget_rows // per_row_bytes
        tile_m = min(512, cap_rows, _round_up(M, row_align))
    tile_m = max(row_align, (tile_m // row_align) * row_align)

    Mp = _round_up(M, tile_m)
    ni = Mp // tile_m

    # Zero-pad to aligned shapes (exact: GELU(0)=0 and padded weight rows/cols
    # are zero, so padding contributes nothing to the real output region).
    x2d = x.reshape(M, C)
    if (Mp, Cp) != (M, C):
        x2d = jnp.pad(x2d, ((0, Mp - M), (0, Cp - C)))
    wfc = w_fc if (Cp, Hp) == (C, H) else jnp.pad(w_fc, ((0, Cp - C), (0, Hp - H)))
    bfc = b_fc if Hp == H else jnp.pad(b_fc, (0, Hp - H))
    wpr = w_proj if (Hp, Cp) == (H, C) else jnp.pad(w_proj, ((0, Hp - H), (0, Cp - C)))
    bpr = b_proj if Cp == C else jnp.pad(b_proj, (0, Cp - C))
    bfc2 = bfc.reshape(1, Hp)
    bpr2 = bpr.reshape(1, Cp)

    kernel_resident, kernel_f32out, kernel_scratch = _make_kernels(bool(mxu_bf16))
    if nj == 1:
        kernel, scratch = kernel_resident, []
    elif out_dtype == jnp.dtype(jnp.float32):
        kernel, scratch = kernel_f32out, []
    else:
        kernel, scratch = kernel_scratch, [pltpu.VMEM((tile_m, Cp), jnp.float32)]

    # Advisory cost: weights re-stream once per row tile unless resident.
    w_stream_factor = 1 if nj == 1 else ni
    cost = pl.CostEstimate(
        flops=4 * Mp * Cp * Hp,                       # two matmuls
        transcendentals=Mp * Hp,                      # tanh in the GELU
        bytes_accessed=int(
            Mp * Cp * elem + Mp * Cp * out_elem
            + w_stream_factor * 2 * Cp * Hp * w_elem
            + (Hp + Cp) * w_elem),
    )

    out2d = pl.pallas_call(
        kernel,
        out_shape=jax.ShapeDtypeStruct((Mp, Cp), out_dtype),
        grid_spec=pltpu.PrefetchScalarGridSpec(
            num_scalar_prefetch=0,
            grid=(ni, nj),
            in_specs=[
                pl.BlockSpec((tile_m, Cp), lambda i, j: (i, 0)),   # x rows
                pl.BlockSpec((Cp, tile_h), lambda i, j: (0, j)),   # W_fc col tile
                pl.BlockSpec((1, tile_h), lambda i, j: (0, j)),    # b_fc tile
                pl.BlockSpec((tile_h, Cp), lambda i, j: (j, 0)),   # W_proj row tile
                pl.BlockSpec((1, Cp), lambda i, j: (0, 0)),        # b_proj
            ],
            out_specs=pl.BlockSpec((tile_m, Cp), lambda i, j: (i, 0)),
            scratch_shapes=scratch,
        ),
        compiler_params=pltpu.CompilerParams(
            dimension_semantics=("parallel", "arbitrary"),
            vmem_limit_bytes=_VMEM_LIMIT_BYTES,
        ),
        cost_estimate=cost,
    )(x2d, wfc, bfc2, wpr, bpr2)

    return out2d[:M, :C].reshape(B, T, C)


def mlp_reference(x, w_fc, b_fc, w_proj, b_proj):
    """Pure-JAX reference mirroring the PyTorch module (f32 math)."""
    h = x.astype(jnp.float32) @ w_fc.astype(jnp.float32) + b_fc.astype(jnp.float32)
    g = 0.5 * h * (1.0 + jnp.tanh(_GELU_C * (h + 0.044715 * h**3)))
    return g @ w_proj.astype(jnp.float32) + b_proj.astype(jnp.float32)


if __name__ == "__main__":
    def make_inputs(key, B, T, C):
        H = 4 * C
        kx, k1, k2, k3, k4 = jax.random.split(key, 5)
        x = jax.random.normal(kx, (B, T, C), dtype=jnp.float32)
        bound_fc = 1.0 / math.sqrt(C)
        w_fc = jax.random.uniform(k1, (C, H), minval=-bound_fc, maxval=bound_fc,
                                  dtype=jnp.float32)
        b_fc = jax.random.uniform(k2, (H,), minval=-bound_fc, maxval=bound_fc,
                                  dtype=jnp.float32)
        bound_pr = 1.0 / math.sqrt(H)
        w_proj = jax.random.uniform(k3, (H, C), minval=-bound_pr, maxval=bound_pr,
                                    dtype=jnp.float32)
        b_proj = jax.random.uniform(k4, (C,), minval=-bound_pr, maxval=bound_pr,
                                    dtype=jnp.float32)
        return x, w_fc, b_fc, w_proj, b_proj

    key = jax.random.PRNGKey(0)
    ka, kb = jax.random.split(key)

    # --- Config A: batch=2, seq=8, n_embed=32 (H=128) -> resident-weight path.
    xa, wfa, bfa, wpa, bpa = make_inputs(ka, 2, 8, 32)
    ref_a = mlp_reference(xa, wfa, bfa, wpa, bpa)

    out = jax.block_until_ready(mlp_pallas(xa, wfa, bfa, wpa, bpa))
    assert out.shape == xa.shape
    assert jnp.allclose(out, ref_a, atol=1e-5, rtol=1e-5), "f32 resident mismatch"

    # Same inputs, bf16 MXU operands (f32 accumulation + f32 GELU in-kernel).
    out_mxu = jax.block_until_ready(
        mlp_pallas(xa, wfa, bfa, wpa, bpa, mxu_bf16=True))
    assert jnp.allclose(out_mxu, ref_a, atol=5e-2, rtol=5e-2), "mxu_bf16 mismatch"

    # --- Config B: n_embed=64 (H=256), forced tile_h=128 -> streamed-weight
    # paths (f32 output accumulates into o_ref; bf16 output uses f32 scratch).
    xb, wfb, bfb, wpb, bpb = make_inputs(kb, 2, 8, 64)
    ref_b = mlp_reference(xb, wfb, bfb, wpb, bpb)

    out_stream = jax.block_until_ready(
        mlp_pallas(xb, wfb, bfb, wpb, bpb, tile_h=128))
    assert jnp.allclose(out_stream, ref_b, atol=1e-5, rtol=1e-5), \
        "f32 streamed mismatch"

    out_bf16 = jax.block_until_ready(
        mlp_pallas(xb.astype(jnp.bfloat16),
                   wfb.astype(jnp.bfloat16), bfb.astype(jnp.bfloat16),
                   wpb.astype(jnp.bfloat16), bpb.astype(jnp.bfloat16),
                   tile_h=128))
    assert out_bf16.dtype == jnp.bfloat16
    assert jnp.allclose(out_bf16.astype(jnp.float32), ref_b, atol=1e-1, rtol=1e-1), \
        "bf16 streamed mismatch"

    print("KERNEL_OK")
</pallas_src>

<mosaic_0001>
module attributes {stable_mosaic.version = 11 : i64} {
  func.func @kernel_resident(%arg0: i32, %arg1: i32, %arg2: memref<16x128xf32, #tpu.memory_space<vmem>>, %arg3: memref<128x128xf32, #tpu.memory_space<vmem>>, %arg4: memref<1x128xf32, #tpu.memory_space<vmem>>, %arg5: memref<128x128xf32, #tpu.memory_space<vmem>>, %arg6: memref<1x128xf32, #tpu.memory_space<vmem>>, %arg7: memref<16x128xf32, #tpu.memory_space<vmem>>) attributes {dimension_semantics = [#tpu.dimension_semantics<parallel>, #tpu.dimension_semantics<arbitrary>], iteration_bounds = array<i64: 1, 1>, scalar_prefetch = 0 : i64, scratch_operands = 0 : i64, tpu.core_type = #tpu.core_type<tc>, window_params = [{transform_indices = @transform_0, window_bounds = array<i64: 16, 128>}, {transform_indices = @transform_1, window_bounds = array<i64: 128, 128>}, {transform_indices = @transform_2, window_bounds = array<i64: 1, 128>}, {transform_indices = @transform_3, window_bounds = array<i64: 128, 128>}, {pipeline_mode = #tpu.pipeline_mode<synchronous>, transform_indices = @transform_4, window_bounds = array<i64: 1, 128>}, {transform_indices = @transform_5, window_bounds = array<i64: 16, 128>}]} {
    %c0 = arith.constant 0 : index
    %c0_0 = arith.constant 0 : index
    %0 = vector.load %arg2[%c0, %c0_0] : memref<16x128xf32, #tpu.memory_space<vmem>>, vector<16x128xf32>
    %c0_1 = arith.constant 0 : index
    %c0_2 = arith.constant 0 : index
    %1 = vector.load %arg3[%c0_1, %c0_2] : memref<128x128xf32, #tpu.memory_space<vmem>>, vector<128x128xf32>
    %cst = arith.constant dense<0.000000e+00> : vector<16x128xf32>
    %2 = tpu.matmul %0, %1, %cst {dimension_numbers = #tpu.dot_dimension_numbers<[1], [0], [0], [1], [0, 0, 1, 1], [], []>} : vector<16x128xf32>, vector<128x128xf32>, vector<16x128xf32> -> vector<16x128xf32>
    %c0_3 = arith.constant 0 : index
    %c0_4 = arith.constant 0 : index
    %3 = vector.load %arg4[%c0_3, %c0_4] : memref<1x128xf32, #tpu.memory_space<vmem>>, vector<1x128xf32>
    %4 = vector.broadcast %3 : vector<1x128xf32> to vector<16x128xf32>
    %5 = arith.addf %2, %4 : vector<16x128xf32>
    %cst_5 = arith.constant 5.000000e-01 : f32
    %6 = vector.broadcast %cst_5 : f32 to vector<16x128xf32>
    %7 = arith.mulf %6, %5 : vector<16x128xf32>
    %8 = arith.mulf %5, %5 : vector<16x128xf32>
    %9 = arith.mulf %8, %5 : vector<16x128xf32>
    %cst_6 = arith.constant 4.471500e-02 : f32
    %10 = vector.broadcast %cst_6 : f32 to vector<16x128xf32>
    %11 = arith.mulf %10, %9 : vector<16x128xf32>
    %12 = arith.addf %5, %11 : vector<16x128xf32>
    %cst_7 = arith.constant 0.797884583 : f32
    %13 = vector.broadcast %cst_7 : f32 to vector<16x128xf32>
    %14 = arith.mulf %13, %12 : vector<16x128xf32>
    %15 = math.tanh %14 : vector<16x128xf32>
    %cst_8 = arith.constant 1.000000e+00 : f32
    %16 = vector.broadcast %cst_8 : f32 to vector<16x128xf32>
    %17 = arith.addf %16, %15 : vector<16x128xf32>
    %18 = arith.mulf %7, %17 : vector<16x128xf32>
    %c0_9 = arith.constant 0 : index
    %c0_10 = arith.constant 0 : index
    %19 = vector.load %arg5[%c0_9, %c0_10] : memref<128x128xf32, #tpu.memory_space<vmem>>, vector<128x128xf32>
    %cst_11 = arith.constant dense<0.000000e+00> : vector<16x128xf32>
    %20 = tpu.matmul %18, %19, %cst_11 {dimension_numbers = #tpu.dot_dimension_numbers<[1], [0], [0], [1], [0, 0, 1, 1], [], []>} : vector<16x128xf32>, vector<128x128xf32>, vector<16x128xf32> -> vector<16x128xf32>
    %c0_12 = arith.constant 0 : index
    %c0_13 = arith.constant 0 : index
    %21 = vector.load %arg6[%c0_12, %c0_13] : memref<1x128xf32, #tpu.memory_space<vmem>>, vector<1x128xf32>
    %22 = vector.broadcast %21 : vector<1x128xf32> to vector<16x128xf32>
    %23 = arith.addf %20, %22 : vector<16x128xf32>
    %c0_14 = arith.constant 0 : index
    %c0_15 = arith.constant 0 : index
    %24 = vector.load %arg7[%c0_14, %c0_15] : memref<16x128xf32, #tpu.memory_space<vmem>>, vector<16x128xf32>
    tpu.vector_store %arg7[%c0_14, %c0_15], %23 {strides = array<i32>} : memref<16x128xf32, #tpu.memory_space<vmem>>, vector<16x128xf32>,
    return
  }
  func.func @transform_0(%arg0: i32, %arg1: i32) -> (i32, i32) {
    %c0_i32 = arith.constant 0 : i32
    %c0_i32_0 = arith.constant 0 : i32
    return %arg0, %c0_i32 : i32, i32
  }
  func.func @transform_1(%arg0: i32, %arg1: i32) -> (i32, i32) {
    %c0_i32 = arith.constant 0 : i32
    %c0_i32_0 = arith.constant 0 : i32
    return %c0_i32, %arg1 : i32, i32
  }
  func.func @transform_2(%arg0: i32, %arg1: i32) -> (i32, i32) {
    %c0_i32 = arith.constant 0 : i32
    %c0_i32_0 = arith.constant 0 : i32
    return %c0_i32, %arg1 : i32, i32
  }
  func.func @transform_3(%arg0: i32, %arg1: i32) -> (i32, i32) {
    %c0_i32 = arith.constant 0 : i32
    %c0_i32_0 = arith.constant 0 : i32
    return %arg1, %c0_i32 : i32, i32
  }
  func.func @transform_4(%arg0: i32, %arg1: i32) -> (i32, i32) {
    %c0_i32 = arith.constant 0 : i32
    %c0_i32_0 = arith.constant 0 : i32
    %c0_i32_1 = arith.constant 0 : i32
    return %c0_i32, %c0_i32_0 : i32, i32
  }
  func.func @transform_5(%arg0: i32, %arg1: i32) -> (i32, i32) {
    %c0_i32 = arith.constant 0 : i32
    %c0_i32_0 = arith.constant 0 : i32
    return %arg0, %c0_i32 : i32, i32
  }
}

</mosaic_0001>

<llo_original>
// kernel: tpu_custom_call.1
$region0: #{tpu_custom_call.1}
  #allocation0 [shape = 'u32[]', space=smem, size = 0x4, offset = 0x4, fixed_abs, tag = 'smem constant byte address 0x4 - core index']
  #allocation1 [shape = 'u32[144,128]{1,0:T(1,128)}', space=vmem, size = 0x12000, scoped, tag = 'internal scratch']
  %s0 = inlined_call_operand.hbm [shape: f32[16,128], index: 0, kind: input, shape index: {}]
  %s1 = inlined_call_operand.hbm [shape: f32[128,128], index: 1, kind: input, shape index: {}]
  %s2 = inlined_call_operand.vmem [shape: f32[1,128], index: 2, kind: input, shape index: {}]
  %s3 = inlined_call_operand.hbm [shape: f32[128,128], index: 3, kind: input, shape index: {}]
  %s4 = inlined_call_operand.vmem [shape: f32[1,128], index: 4, kind: input, shape index: {}]
  %s5 = inlined_call_operand.hbm [shape: f32[16,128], index: 5, kind: output, shape index: {}]
  %s6 = sld [smem:[#allocation0]]
  $region42: #{tpu_custom_call.1} parent=0
    _
  %s8 = ssub.s32 1, %s6
  %s9 = scalar_select 0, %s8, %s6
  $region1: #{tpu_custom_call.1} parent=0
    #allocation2 [shape = 'u8[8192]{0}', space=vmem, size = 0x2000, scoped, tag = 'input window, operand 0, single buffered']
    #allocation3 [shape = 's32[1]{0}', space=sflag, size = 0x4, scoped, tag = 'scoped memory for tpu_custom_call.1']
    #allocation4 [shape = 's32[1]{0}', space=sflag, size = 0x4, scoped, tag = 'scoped memory for tpu_custom_call.1']
    #allocation5 [shape = 'u8[65536]{0}', space=vmem, size = 0x10000, scoped, tag = 'input window, operand 1, single buffered']
    #allocation6 [shape = 's32[1]{0}', space=sflag, size = 0x4, scoped, tag = 'scoped memory for tpu_custom_call.1']
    #allocation7 [shape = 'u8[65536]{0}', space=vmem, size = 0x10000, scoped, tag = 'input window, operand 3, single buffered']
    #allocation8 [shape = 'u8[8192]{0}', space=vmem, size = 0x2000, scoped, tag = 'output window, operand 0, single buffered']
    %10 = vsyncpa [#allocation3], 0
    %11 = vsyncpa [#allocation6], 0
    %12 = vsyncpa [#allocation4], 0
    // Predicated region
    $region2: #{tpu_custom_call.1} parent=1 // pred_check
      _
    $region3: #{tpu_custom_call.1} parent=1 // pred_check_branch
      %14 = sbr.rel (0) target = $region5
    $region4: #{tpu_custom_call.1} parent=1 // pred_region
      %s16 = ssub.s32 256, 256
      %17 = vsyncadd [#allocation3], %s16
      %s18 = sshll.u32 [#allocation2], 4
      %s19 = int_to_ptr.vmem [resolvable:$true] %s18
      %24 = dma.hbm_to_vmem [thread:$0]  %s0, 256, %s19, [#allocation3], 128, 128, 8
    $region5: #{tpu_custom_call.1} parent=1 // pred_fallthru
      _
    // Predicated region
    $region6: #{tpu_custom_call.1} parent=1 // pred_check
      _
    $region7: #{tpu_custom_call.1} parent=1 // pred_check_branch
      %26 = sbr.rel (0) target = $region9
    $region8: #{tpu_custom_call.1} parent=1 // pred_region
      %s28 = ssub.s32 2048, 2048
      %29 = vsyncadd [#allocation6], %s28
      %s30 = sshll.u32 [#allocation5], 4
      %s31 = int_to_ptr.vmem [resolvable:$true] %s30
      %36 = dma.hbm_to_vmem [thread:$0]  %s1, 2048, %s31, [#allocation6], 128, 128, 8
    $region9: #{tpu_custom_call.1} parent=1 // pred_fallthru
      _
    // Predicated region
    $region10: #{tpu_custom_call.1} parent=1 // pred_check
      _
    $region11: #{tpu_custom_call.1} parent=1 // pred_check_branch
      %38 = sbr.rel (0) target = $region13
    $region12: #{tpu_custom_call.1} parent=1 // pred_region
      _
    $region13: #{tpu_custom_call.1} parent=1 // pred_fallthru
      _
    // Predicated region
    $region14: #{tpu_custom_call.1} parent=1 // pred_check
      _
    $region15: #{tpu_custom_call.1} parent=1 // pred_check_branch
      %40 = sbr.rel (0) target = $region17
    $region16: #{tpu_custom_call.1} parent=1 // pred_region
      %s42 = ssub.s32 2048, 2048
      %43 = vsyncadd [#allocation6], %s42
      %s44 = sshll.u32 [#allocation7], 4
      %s45 = int_to_ptr.vmem [resolvable:$true] %s44
      %50 = dma.hbm_to_vmem [thread:$0]  %s3, 2048, %s45, [#allocation6], 128, 128, 8
    $region17: #{tpu_custom_call.1} parent=1 // pred_fallthru
      _
    // Predicated region
    $region18: #{tpu_custom_call.1} parent=1 // pred_check
      _
    $region19: #{tpu_custom_call.1} parent=1 // pred_check_branch
      %52 = sbr.rel (0) target = $region21
    $region20: #{tpu_custom_call.1} parent=1 // pred_region
      _
    $region21: #{tpu_custom_call.1} parent=1 // pred_fallthru
      _
    // Predicated region
    $region22: #{tpu_custom_call.1} parent=1 // pred_check
      _
    $region23: #{tpu_custom_call.1} parent=1 // pred_check_branch
      %54 = sbr.rel (0) target = $region25
    $region24: #{tpu_custom_call.1} parent=1 // pred_region
      %55 = dma.done [#allocation3], 256
    $region25: #{tpu_custom_call.1} parent=1 // pred_fallthru
      _
    // Predicated region
    $region26: #{tpu_custom_call.1} parent=1 // pred_check
      _
    $region27: #{tpu_custom_call.1} parent=1 // pred_check_branch
      %57 = sbr.rel (0) target = $region29
    $region28: #{tpu_custom_call.1} parent=1 // pred_region
      %58 = dma.done [#allocation6], 2048
    $region29: #{tpu_custom_call.1} parent=1 // pred_fallthru
      _
    // Predicated region
    $region30: #{tpu_custom_call.1} parent=1 // pred_check
      _
    $region31: #{tpu_custom_call.1} parent=1 // pred_check_branch
      %60 = sbr.rel (0) target = $region33
    $region32: #{tpu_custom_call.1} parent=1 // pred_region
      %61 = dma.done [#allocation6], 2048
    $region33: #{tpu_custom_call.1} parent=1 // pred_fallthru
      _
    %v62 = vld [vmem:[#allocation2] sm:$0xff]
    %v63 = vld [vmem:[#allocation2 + $0x8] sm:$0xff]
    %v64 = vld [vmem:[#allocation5] sm:$0xff]
    %v65 = vld [vmem:[#allocation5 + $0x8] sm:$0xff]
    %v66 = vld [vmem:[#allocation5 + $0x10] sm:$0xff]
    %v67 = vld [vmem:[#allocation5 + $0x18] sm:$0xff]
    %v68 = vld [vmem:[#allocation5 + $0x20] sm:$0xff]
    %v69 = vld [vmem:[#allocation5 + $0x28] sm:$0xff]
    %v70 = vld [vmem:[#allocation5 + $0x30] sm:$0xff]
    %v71 = vld [vmem:[#allocation5 + $0x38] sm:$0xff]
    %v72 = vld [vmem:[#allocation5 + $0x40] sm:$0xff]
    %v73 = vld [vmem:[#allocation5 + $0x48] sm:$0xff]
    %v74 = vld [vmem:[#allocation5 + $0x50] sm:$0xff]
    %v75 = vld [vmem:[#allocation5 + $0x58] sm:$0xff]
    %v76 = vld [vmem:[#allocation5 + $0x60] sm:$0xff]
    %v77 = vld [vmem:[#allocation5 + $0x68] sm:$0xff]
    %v78 = vld [vmem:[#allocation5 + $0x70] sm:$0xff]
    %v79 = vld [vmem:[#allocation5 + $0x78] sm:$0xff]
    %v80 = vld [vmem:[%s2] sm:$0x1]
    %v82 = vlaneseq
    %v83 = vshrl.u32 %v82, 7
    %v84 = vsub.s32 0, %v83
    %v85 = vrot.slane %v80, %v84
    %87 = vmatprep.subr.mxu0 0.0
    %88 = vmatpush1.msra.mxu0 %v64
    %89 = vmatprep.subr.mxu0 0.0
    %90 = vmatpush1.msra.mxu0 %v65
    %91 = vmatprep.subr.mxu0 0.0
    %92 = vmatpush1.msra.mxu0 %v66
    %93 = vmatprep.subr.mxu0 0.0
    %94 = vmatpush1.msra.mxu0 %v67
    %95 = vmatprep.subr.mxu0 0.0
    %96 = vmatpush1.msra.mxu0 %v68
    %97 = vmatprep.subr.mxu0 0.0
    %98 = vmatpush1.msra.mxu0 %v69
    %99 = vmatprep.subr.mxu0 0.0
    %100 = vmatpush1.msra.mxu0 %v70
    %101 = vmatprep.subr.mxu0 0.0
    %102 = vmatpush1.msra.mxu0 %v71
    %103 = vmatprep.subr.mxu0 0.0
    %104 = vmatpush1.msra.mxu0 %v72
    %105 = vmatprep.subr.mxu0 0.0
    %106 = vmatpush1.msra.mxu0 %v73
    %107 = vmatprep.subr.mxu0 0.0
    %108 = vmatpush1.msra.mxu0 %v74
    %109 = vmatprep.subr.mxu0 0.0
    %110 = vmatpush1.msra.mxu0 %v75
    %111 = vmatprep.subr.mxu0 0.0
    %112 = vmatpush1.msra.mxu0 %v76
    %113 = vmatprep.subr.mxu0 0.0
    %114 = vmatpush1.msra.mxu0 %v77
    %115 = vmatprep.subr.mxu0 0.0
    %116 = vmatpush1.msra.mxu0 %v78
    %117 = vmatprep.subr.mxu0 0.0
    %118 = vmatpush1.msra.mxu0 %v79
    %119 = vmatprep.subr.mxu0 0.0
    %120 = vmatpush1.msra.mxu0 0.0
    %121 = vmatprep.subr.mxu0 0.0
    %122 = vmatpush1.msra.mxu0 0.0
    %123 = vmatprep.subr.mxu0 0.0
    %124 = vmatpush1.msra.mxu0 0.0
    %125 = vmatprep.subr.mxu0 0.0
    %126 = vmatpush1.msra.mxu0 0.0
    %127 = vmatprep.subr.mxu0 0.0
    %128 = vmatpush1.msra.mxu0 0.0
    %129 = vmatprep.subr.mxu0 0.0
    %130 = vmatpush1.msra.mxu0 0.0
    %131 = vmatprep.subr.mxu0 0.0
    %132 = vmatpush1.msra.mxu0 0.0
    %133 = vmatprep.subr.mxu0 0.0
    %134 = vmatpush1.msra.mxu0 0.0
    %135 = vmatprep.subr.mxu0 0.0
    %136 = vmatpush1.msra.mxu0 0.0
    %137 = vmatprep.subr.mxu0 0.0
    %138 = vmatpush1.msra.mxu0 0.0
    %139 = vmatprep.subr.mxu0 0.0
    %140 = vmatpush1.msra.mxu0 0.0
    %141 = vmatprep.subr.mxu0 0.0
    %142 = vmatpush1.msra.mxu0 0.0
    %143 = vmatprep.subr.mxu0 0.0
    %144 = vmatpush1.msra.mxu0 0.0
    %145 = vmatprep.subr.mxu0 0.0
    %146 = vmatpush1.msra.mxu0 0.0
    %147 = vmatprep.subr.mxu0 0.0
    %148 = vmatpush1.msra.mxu0 0.0
    %149 = vmatprep.subr.mxu0 0.0
    %150 = vmatpush1.msra.mxu0 0.0
    %151 = vmatprep.mubr.f32.mxu0 0.0
    %152 = vmatmul.mubr.f32.gmra.mrb[0].mxu0 %v62
    %v153 = vpop.f32.mrb[0].mxu0
    %v154 = vadd.f32 %v85, %v153
    %v155 = vpop.f32.mrb[0].mxu0
    %156 = vmatprep.mubr.f32.mxu0 0.0
    %157 = vmatmul.mubr.f32.gmra.mrb[0].mxu0 %v63
    %v158 = vpop.f32.mrb[0].mxu0
    %v159 = vadd.f32 %v85, %v158
    %v160 = vpop.f32.mrb[0].mxu0
    %161 = vdwg.mxu0
    %v162 = vmul.f32 %v154, 0.5
    %v163 = vmul.f32 %v159, 0.5
    %v164 = vmul.f32 %v154, %v154
    %v165 = vmul.f32 %v159, %v159
    %v166 = vmul.f32 %v164, %v154
    %v167 = vmul.f32 %v165, %v159
    %v168 = vmul.f32 %v166, 0.044715
    %v169 = vmul.f32 %v167, 0.044715
    %v170 = vadd.f32 %v154, %v168
    %v171 = vadd.f32 %v159, %v169
    %v172 = vmul.f32 %v170, 0.7978846
    %v173 = vmul.f32 %v171, 0.7978846
    %v174 = vtanh.pop %v172
    %v175 = vtanh.pop %v173
    %v176 = vadd.f32 %v174, 1.0
    %v177 = vadd.f32 %v175, 1.0
    %v178 = vmul.f32 %v162, %v176
    %v179 = vmul.f32 %v163, %v177
    %v180 = vld [vmem:[#allocation7] sm:$0xff]
    %v181 = vld [vmem:[#allocation7 + $0x8] sm:$0xff]
    %v182 = vld [vmem:[#allocation7 + $0x10] sm:$0xff]
    %v183 = vld [vmem:[#allocation7 + $0x18] sm:$0xff]
    %v184 = vld [vmem:[#allocation7 + $0x20] sm:$0xff]
    %v185 = vld [vmem:[#allocation7 + $0x28] sm:$0xff]
    %v186 = vld [vmem:[#allocation7 + $0x30] sm:$0xff]
    %v187 = vld [vmem:[#allocation7 + $0x38] sm:$0xff]
    %v188 = vld [vmem:[#allocation7 + $0x40] sm:$0xff]
    %v189 = vld [vmem:[#allocation7 + $0x48] sm:$0xff]
    %v190 = vld [vmem:[#allocation7 + $0x50] sm:$0xff]
    %v191 = vld [vmem:[#allocation7 + $0x58] sm:$0xff]
    %v192 = vld [vmem:[#allocation7 + $0x60] sm:$0xff]
    %v193 = vld [vmem:[#allocation7 + $0x68] sm:$0xff]
    %v194 = vld [vmem:[#allocation7 + $0x70] sm:$0xff]
    %v195 = vld [vmem:[#allocation7 + $0x78] sm:$0xff]
    %v196 = vld [vmem:[%s4] sm:$0x1]
    %v198 = vlaneseq
    %v199 = vshrl.u32 %v198, 7
    %v200 = vsub.s32 0, %v199
    %v201 = vrot.slane %v196, %v200
    %203 = vmatprep.subr.mxu0 0.0
    %204 = vmatpush1.msra.mxu0 %v180
    %205 = vmatprep.subr.mxu0 0.0
    %206 = vmatpush1.msra.mxu0 %v181
    %207 = vmatprep.subr.mxu0 0.0
    %208 = vmatpush1.msra.mxu0 %v182
    %209 = vmatprep.subr.mxu0 0.0
    %210 = vmatpush1.msra.mxu0 %v183
    %211 = vmatprep.subr.mxu0 0.0
    %212 = vmatpush1.msra.mxu0 %v184
    %213 = vmatprep.subr.mxu0 0.0
    %214 = vmatpush1.msra.mxu0 %v185
    %215 = vmatprep.subr.mxu0 0.0
    %216 = vmatpush1.msra.mxu0 %v186
    %217 = vmatprep.subr.mxu0 0.0
    %218 = vmatpush1.msra.mxu0 %v187
    %219 = vmatprep.subr.mxu0 0.0
    %220 = vmatpush1.msra.mxu0 %v188
    %221 = vmatprep.subr.mxu0 0.0
    %222 = vmatpush1.msra.mxu0 %v189
    %223 = vmatprep.subr.mxu0 0.0
    %224 = vmatpush1.msra.mxu0 %v190
    %225 = vmatprep.subr.mxu0 0.0
    %226 = vmatpush1.msra.mxu0 %v191
    %227 = vmatprep.subr.mxu0 0.0
    %228 = vmatpush1.msra.mxu0 %v192
    %229 = vmatprep.subr.mxu0 0.0
    %230 = vmatpush1.msra.mxu0 %v193
    %231 = vmatprep.subr.mxu0 0.0
    %232 = vmatpush1.msra.mxu0 %v194
    %233 = vmatprep.subr.mxu0 0.0
    %234 = vmatpush1.msra.mxu0 %v195
    %235 = vmatprep.subr.mxu0 0.0
    %236 = vmatpush1.msra.mxu0 0.0
    %237 = vmatprep.subr.mxu0 0.0
    %238 = vmatpush1.msra.mxu0 0.0
    %239 = vmatprep.subr.mxu0 0.0
    %240 = vmatpush1.msra.mxu0 0.0
    %241 = vmatprep.subr.mxu0 0.0
    %242 = vmatpush1.msra.mxu0 0.0
    %243 = vmatprep.subr.mxu0 0.0
    %244 = vmatpush1.msra.mxu0 0.0
    %245 = vmatprep.subr.mxu0 0.0
    %246 = vmatpush1.msra.mxu0 0.0
    %247 = vmatprep.subr.mxu0 0.0
    %248 = vmatpush1.msra.mxu0 0.0
    %249 = vmatprep.subr.mxu0 0.0
    %250 = vmatpush1.msra.mxu0 0.0
    %251 = vmatprep.subr.mxu0 0.0
    %252 = vmatpush1.msra.mxu0 0.0
    %253 = vmatprep.subr.mxu0 0.0
    %254 = vmatpush1.msra.mxu0 0.0
    %255 = vmatprep.subr.mxu0 0.0
    %256 = vmatpush1.msra.mxu0 0.0
    %257 = vmatprep.subr.mxu0 0.0
    %258 = vmatpush1.msra.mxu0 0.0
    %259 = vmatprep.subr.mxu0 0.0
    %260 = vmatpush1.msra.mxu0 0.0
    %261 = vmatprep.subr.mxu0 0.0
    %262 = vmatpush1.msra.mxu0 0.0
    %263 = vmatprep.subr.mxu0 0.0
    %264 = vmatpush1.msra.mxu0 0.0
    %265 = vmatprep.subr.mxu0 0.0
    %266 = vmatpush1.msra.mxu0 0.0
    %267 = vmatprep.mubr.f32.mxu0 0.0
    %268 = vmatmul.mubr.f32.gmra.mrb[0].mxu0 %v178
    %v269 = vpop.f32.mrb[0].mxu0
    %v270 = vadd.f32 %v201, %v269
    %v271 = vpop.f32.mrb[0].mxu0
    %272 = vmatprep.mubr.f32.mxu0 0.0
    %273 = vmatmul.mubr.f32.gmra.mrb[0].mxu0 %v179
    %v274 = vpop.f32.mrb[0].mxu0
    %v275 = vadd.f32 %v201, %v274
    %v276 = vpop.f32.mrb[0].mxu0
    %277 = vdwg.mxu0
    %278 = vst [vmem:[#allocation8] sm:$0xff] %v270
    %279 = vst [vmem:[#allocation8 + $0x8] sm:$0xff] %v275
    // Predicated region
    $region34: #{tpu_custom_call.1} parent=1 // pred_check
      _
    $region35: #{tpu_custom_call.1} parent=1 // pred_check_branch
      %281 = sbr.rel (0) target = $region37
    $region36: #{tpu_custom_call.1} parent=1 // pred_region
      %s283 = ssub.s32 256, 256
      %284 = vsyncadd [#allocation4], %s283
      %s285 = sshll.u32 [#allocation8], 4
      %s286 = int_to_ptr.vmem [resolvable:$true] %s285
      %291 = dma.vmem_to_hbm [thread:$0]  %s286, 256, %s5, [#allocation4], 128, 128, 8
    $region37: #{tpu_custom_call.1} parent=1 // pred_fallthru
      _
    // Predicated region
    $region38: #{tpu_custom_call.1} parent=1 // pred_check
      _
    $region39: #{tpu_custom_call.1} parent=1 // pred_check_branch
      %293 = sbr.rel (0) target = $region41
    $region40: #{tpu_custom_call.1} parent=1 // pred_region
      %294 = dma.done [#allocation4], 256
    $region41: #{tpu_custom_call.1} parent=1 // pred_fallthru
      _
    %295 = vsyncpa [#allocation3], 1
    %296 = vsyncpa [#allocation6], 1
    %297 = vsyncpa [#allocation4], 1

</llo_original>
